<compile_context>
chip_gen: v6e
topology: v6e:2x2x1
jax: 0.10.0
libtpu: 0.0.40
codegen_flags: <defaults>
</compile_context>

<pallas_src>
import functools
import math

import jax
import jax.numpy as jnp
from jax.experimental import pallas as pl
from jax.experimental.pallas import tpu as pltpu

# ---- tiling parameters -------------------------------------------------------
LANES = 512                  # lane-dense last dim (multiple of 128)
MAX_BLOCK_ROWS = 1024        # 1024 x 512 f32 = 2 MiB per block
PASS1_SPLIT = 2              # leading "parallel" axis for pass 1 (v7x megacore)
PAD_QUANTUM = 8 * LANES      # minimal (sublane, lane) alignment = 4096 elems
FUSED_MAX_ELEMS = 1 << 20    # <= 4 MiB of f32 -> single fused kernel


# ---- fused small-input kernel (whole array in VMEM) --------------------------
def _fused_kernel(x_ref, o_ref, *, contrast, brightness):
    x = x_ref[...]
    mn = jnp.min(x)
    mx = jnp.max(x)
    y = contrast * x + brightness
    o_ref[...] = jnp.minimum(jnp.maximum(y, mn), mx)


# ---- pass 1: global min / max over lane-dense blocks -------------------------
def _minmax_kernel(x_ref, mn_ref, mx_ref):
    i = pl.program_id(1)

    @pl.when(i == 0)
    def _():
        mn_ref[...] = jnp.full(mn_ref.shape, jnp.inf, mn_ref.dtype)
        mx_ref[...] = jnp.full(mx_ref.shape, -jnp.inf, mx_ref.dtype)

    x = x_ref[...]
    # One sublane reduce per block (hidden under the HBM-bound DMA), then a
    # broadcasting elementwise accumulate into the resident (8, LANES) output.
    mn_ref[...] = jnp.minimum(mn_ref[...], jnp.min(x, axis=0, keepdims=True))
    mx_ref[...] = jnp.maximum(mx_ref[...], jnp.max(x, axis=0, keepdims=True))


# ---- pass 2: elementwise contrast*x + brightness, clamped ---------------------
def _clamp_kernel(bounds_ref, x_ref, o_ref, *, contrast, brightness):
    mn = bounds_ref[0]          # scalars live in SMEM
    mx = bounds_ref[1]
    y = contrast * x_ref[...] + brightness
    o_ref[...] = jnp.minimum(jnp.maximum(y, mn), mx)


# ---- wrappers ------------------------------------------------------------------
def _pad_to_multiple(flat, quantum):
    total = flat.shape[0]
    padded = ((total + quantum - 1) // quantum) * quantum
    if padded != total:
        # mode="edge": pads with an existing element -> min/max unaffected.
        flat = jnp.pad(flat, (0, padded - total), mode="edge")
    return flat


def _fused_path(flat, contrast, brightness):
    flat = _pad_to_multiple(flat, PAD_QUANTUM)
    x2d = flat.reshape(-1, LANES)
    kernel = functools.partial(_fused_kernel, contrast=contrast, brightness=brightness)
    out2d = pl.pallas_call(
        kernel,
        out_shape=jax.ShapeDtypeStruct(x2d.shape, jnp.float32),
    )(x2d)
    return out2d.reshape(-1)


def _two_pass_path(flat, contrast, brightness):
    flat = _pad_to_multiple(flat, PAD_QUANTUM)
    rows = flat.shape[0] // LANES              # guaranteed multiple of 8
    br = math.gcd(rows, MAX_BLOCK_ROWS)        # largest pow2 row-block dividing rows
    nblk = rows // br
    chunk = -(-nblk // PASS1_SPLIT)            # ceil-div: blocks per pass-1 slice
    x2d = flat.reshape(rows, LANES)

    def p1_in_map(c, i):
        # Clamp so ragged nblk re-reads the last block (min/max-neutral).
        return (jnp.minimum(c * chunk + i, nblk - 1), 0)

    mn_part, mx_part = pl.pallas_call(
        _minmax_kernel,
        out_shape=(
            jax.ShapeDtypeStruct((PASS1_SPLIT * 8, LANES), jnp.float32),
            jax.ShapeDtypeStruct((PASS1_SPLIT * 8, LANES), jnp.float32),
        ),
        grid=(PASS1_SPLIT, chunk),
        in_specs=[pl.BlockSpec((br, LANES), p1_in_map)],
        out_specs=(
            pl.BlockSpec((8, LANES), lambda c, i: (c, 0)),
            pl.BlockSpec((8, LANES), lambda c, i: (c, 0)),
        ),
        compiler_params=pltpu.CompilerParams(
            dimension_semantics=("parallel", "arbitrary"),
        ),
    )(x2d)

    # Combine the per-slice partials (tiny XLA reduce).
    bounds = jnp.stack([jnp.min(mn_part), jnp.max(mx_part)]).astype(jnp.float32)

    kernel = functools.partial(_clamp_kernel, contrast=contrast, brightness=brightness)
    out2d = pl.pallas_call(
        kernel,
        out_shape=jax.ShapeDtypeStruct((rows, LANES), jnp.float32),
        grid=(nblk,),
        in_specs=[
            pl.BlockSpec(memory_space=pltpu.MemorySpace.SMEM),   # bounds (2,)
            pl.BlockSpec((br, LANES), lambda i: (i, 0)),
        ],
        out_specs=pl.BlockSpec((br, LANES), lambda i: (i, 0)),
        compiler_params=pltpu.CompilerParams(
            dimension_semantics=("parallel",),
        ),
    )(bounds, x2d)

    return out2d.reshape(-1)


def brightness_forward(x, contrast, brightness=0.2):
    """Pallas TPU implementation of Brightness.forward (any shape, f32 compute)."""
    orig_shape = x.shape
    orig_dtype = x.dtype
    total = x.size
    contrast = float(contrast)
    brightness = float(brightness)

    flat = x.astype(jnp.float32).reshape(-1)
    if total <= FUSED_MAX_ELEMS:
        out_flat = _fused_path(flat, contrast, brightness)
    else:
        out_flat = _two_pass_path(flat, contrast, brightness)

    return out_flat[:total].reshape(orig_shape).astype(orig_dtype)


if __name__ == "__main__":
    key = jax.random.PRNGKey(0)
    k_small, k_big = jax.random.split(key)
    contrast = 1.5

    # Small NCHW input (exercises the fused single-kernel path).
    x_small = jax.random.normal(k_small, (2, 4, 16, 16), dtype=jnp.float32)
    out_small = jax.block_until_ready(brightness_forward(x_small, contrast))
    ref_small = jnp.clip(contrast * x_small + 0.2, jnp.min(x_small), jnp.max(x_small))
    assert out_small.shape == x_small.shape and out_small.dtype == x_small.dtype
    assert jnp.allclose(out_small, ref_small, atol=1e-6), "fused path mismatch"

    # Image batch (exercises the tiled two-pass path: min/max + clamp kernels).
    x_big = jax.random.normal(k_big, (2, 3, 512, 512), dtype=jnp.float32)
    out_big = jax.block_until_ready(brightness_forward(x_big, contrast))
    ref_big = jnp.clip(contrast * x_big + 0.2, jnp.min(x_big), jnp.max(x_big))
    assert out_big.shape == x_big.shape and out_big.dtype == x_big.dtype
    assert jnp.allclose(out_big, ref_big, atol=1e-6), "two-pass path mismatch"

    print("KERNEL_OK")
</pallas_src>

<mosaic_0001>
module attributes {stable_mosaic.version = 11 : i64} {
  func.func @_fused_kernel(%arg0: memref<8x512xf32, #tpu.memory_space<vmem>>, %arg1: memref<8x512xf32, #tpu.memory_space<vmem>>) attributes {dimension_semantics = [], scalar_prefetch = 0 : i64, scratch_operands = 0 : i64, tpu.core_type = #tpu.core_type<tc>} {
    %c0 = arith.constant 0 : index
    %c0_0 = arith.constant 0 : index
    %0 = vector.load %arg0[%c0, %c0_0] : memref<8x512xf32, #tpu.memory_space<vmem>>, vector<8x512xf32>
    %1 = vector.shape_cast %0 : vector<8x512xf32> to vector<1x8x512xf32>
    %cst = arith.constant dense<0x7F800000> : vector<1xf32>
    %2 = vector.multi_reduction <minimumf>, %1, %cst [1, 2] : vector<1x8x512xf32> to vector<1xf32>
    %3 = vector.shape_cast %2 : vector<1xf32> to vector<1x1x1xf32>
    %4 = vector.extract %3[0, 0, 0] : f32 from vector<1x1x1xf32>
    %5 = vector.shape_cast %0 : vector<8x512xf32> to vector<1x8x512xf32>
    %cst_1 = arith.constant dense<0xFF800000> : vector<1xf32>
    %6 = vector.multi_reduction <maximumf>, %5, %cst_1 [1, 2] : vector<1x8x512xf32> to vector<1xf32>
    %7 = vector.shape_cast %6 : vector<1xf32> to vector<1x1x1xf32>
    %8 = vector.extract %7[0, 0, 0] : f32 from vector<1x1x1xf32>
    %cst_2 = arith.constant 1.500000e+00 : f32
    %9 = vector.broadcast %cst_2 : f32 to vector<8x512xf32>
    %10 = arith.mulf %9, %0 : vector<8x512xf32>
    %cst_3 = arith.constant 2.000000e-01 : f32
    %11 = vector.broadcast %cst_3 : f32 to vector<8x512xf32>
    %12 = arith.addf %10, %11 : vector<8x512xf32>
    %13 = vector.broadcast %4 : f32 to vector<8x512xf32>
    %14 = arith.maximumf %12, %13 : vector<8x512xf32>
    %15 = vector.broadcast %8 : f32 to vector<8x512xf32>
    %16 = arith.minimumf %14, %15 : vector<8x512xf32>
    %c0_4 = arith.constant 0 : index
    %c0_5 = arith.constant 0 : index
    %17 = vector.load %arg1[%c0_4, %c0_5] : memref<8x512xf32, #tpu.memory_space<vmem>>, vector<8x512xf32>
    tpu.vector_store %arg1[%c0_4, %c0_5], %16 {strides = array<i32>} : memref<8x512xf32, #tpu.memory_space<vmem>>, vector<8x512xf32>,
    return
  }
}

</mosaic_0001>

<llo_original>
// kernel: tpu_custom_call.1
$region0: #{tpu_custom_call.1}
  #allocation0 [shape = 'u32[]', space=smem, size = 0x4, offset = 0x4, fixed_abs, tag = 'smem constant byte address 0x4 - core index']
  #allocation1 [shape = 'u32[144,128]{1,0:T(1,128)}', space=vmem, size = 0x12000, scoped, tag = 'internal scratch']
  %s0 = inlined_call_operand.hbm [shape: f32[8,512], index: 0, kind: input, shape index: {}]
  %s1 = inlined_call_operand.hbm [shape: f32[8,512], index: 1, kind: output, shape index: {}]
  %s2 = sld [smem:[#allocation0]]
  $region18: #{tpu_custom_call.1} parent=0
    _
  %s4 = ssub.s32 1, %s2
  %s5 = scalar_select 0, %s4, %s2
  $region1: #{tpu_custom_call.1} parent=0
    #allocation2 [shape = 'u8[16384]{0}', space=vmem, size = 0x4000, scoped, tag = 'input window, operand 0, single buffered']
    #allocation3 [shape = 's32[1]{0}', space=sflag, size = 0x4, scoped, tag = 'scoped memory for tpu_custom_call.1']
    #allocation4 [shape = 's32[1]{0}', space=sflag, size = 0x4, scoped, tag = 'scoped memory for tpu_custom_call.1']
    #allocation5 [shape = 'u8[16384]{0}', space=vmem, size = 0x4000, scoped, tag = 'output window, operand 0, single buffered']
    %6 = vsyncpa [#allocation3], 0
    %7 = vsyncpa [#allocation4], 0
    // Predicated region
    $region2: #{tpu_custom_call.1} parent=1 // pred_check
      _
    $region3: #{tpu_custom_call.1} parent=1 // pred_check_branch
      %9 = sbr.rel (0) target = $region5
    $region4: #{tpu_custom_call.1} parent=1 // pred_region
      %s11 = ssub.s32 512, 512
      %12 = vsyncadd [#allocation3], %s11
      %s14 = sshll.u32 [#allocation2], 4
      %s15 = int_to_ptr.vmem [resolvable:$true] %s14
      %17 = dma.hbm_to_vmem [thread:$0]  %s0, 512, %s15, [#allocation3]
    $region5: #{tpu_custom_call.1} parent=1 // pred_fallthru
      _
    // Predicated region
    $region6: #{tpu_custom_call.1} parent=1 // pred_check
      _
    $region7: #{tpu_custom_call.1} parent=1 // pred_check_branch
      %19 = sbr.rel (0) target = $region9
    $region8: #{tpu_custom_call.1} parent=1 // pred_region
      %20 = dma.done [#allocation3], 512
    $region9: #{tpu_custom_call.1} parent=1 // pred_fallthru
      _
    %v21 = vld [vmem:[#allocation2] sm:$0xff]
    %v22 = vld [vmem:[#allocation2 + $0x8] sm:$0xff]
    %v23 = vld [vmem:[#allocation2 + $0x10] sm:$0xff]
    %v24 = vld [vmem:[#allocation2 + $0x18] sm:$0xff]
    %v25 = vmin.f32 %v21, %v22
    %v26 = vmin.f32 %v23, %v24
    %v27 = vmin.f32 %v25, %v26
    %28 = vmin.xlane.f32.xlu0 %v27
    %v29 = vpop.xlane.xlu0 %28
    %v30 = vrot.slane %v29, 4
    %v31 = vmin.f32 %v29, %v30
    %v32 = vrot.slane %v31, 2
    %v33 = vmin.f32 %v31, %v32
    %v34 = vrot.slane %v33, 1
    %v35 = vmin.f32 %v33, %v34
    %s36 = vtos %v35
    %v37 = vmax.f32 %v21, %v22
    %v38 = vmax.f32 %v23, %v24
    %v39 = vmax.f32 %v37, %v38
    %40 = vmax.xlane.f32.xlu0 %v39
    %v41 = vpop.xlane.xlu0 %40
    %v42 = vrot.slane %v41, 4
    %v43 = vmax.f32 %v41, %v42
    %v44 = vrot.slane %v43, 2
    %v45 = vmax.f32 %v43, %v44
    %v46 = vrot.slane %v45, 1
    %v47 = vmax.f32 %v45, %v46
    %s48 = vtos %v47
    %v49 = vmul.f32 %v21, 1.5
    %v50 = vmul.f32 %v22, 1.5
    %v51 = vmul.f32 %v23, 1.5
    %v52 = vmul.f32 %v24, 1.5
    %v53 = vadd.f32 %v49, 0.2
    %v54 = vadd.f32 %v50, 0.2
    %v55 = vadd.f32 %v51, 0.2
    %v56 = vadd.f32 %v52, 0.2
    %v57 = vstv %s36
    %v58 = vmax.f32 %v53, %v57
    %v59 = vmax.f32 %v54, %v57
    %v60 = vmax.f32 %v55, %v57
    %v61 = vmax.f32 %v56, %v57
    %v62 = vstv %s48
    %v63 = vmin.f32 %v58, %v62
    %v64 = vmin.f32 %v59, %v62
    %v65 = vmin.f32 %v60, %v62
    %v66 = vmin.f32 %v61, %v62
    %67 = vst [vmem:[#allocation5] sm:$0xff] %v63
    %68 = vst [vmem:[#allocation5 + $0x8] sm:$0xff] %v64
    %69 = vst [vmem:[#allocation5 + $0x10] sm:$0xff] %v65
    %70 = vst [vmem:[#allocation5 + $0x18] sm:$0xff] %v66
    // Predicated region
    $region10: #{tpu_custom_call.1} parent=1 // pred_check
      _
    $region11: #{tpu_custom_call.1} parent=1 // pred_check_branch
      %72 = sbr.rel (0) target = $region13
    $region12: #{tpu_custom_call.1} parent=1 // pred_region
      %s74 = ssub.s32 512, 512
      %75 = vsyncadd [#allocation4], %s74
      %s77 = sshll.u32 [#allocation5], 4
      %s78 = int_to_ptr.vmem [resolvable:$true] %s77
      %80 = dma.vmem_to_hbm [thread:$0]  %s78, 512, %s1, [#allocation4]
    $region13: #{tpu_custom_call.1} parent=1 // pred_fallthru
      _
    // Predicated region
    $region14: #{tpu_custom_call.1} parent=1 // pred_check
      _
    $region15: #{tpu_custom_call.1} parent=1 // pred_check_branch
      %82 = sbr.rel (0) target = $region17
    $region16: #{tpu_custom_call.1} parent=1 // pred_region
      %83 = dma.done [#allocation4], 512
    $region17: #{tpu_custom_call.1} parent=1 // pred_fallthru
      _
    %84 = vsyncpa [#allocation3], 1
    %85 = vsyncpa [#allocation4], 1

</llo_original>
